<compile_context>
chip_gen: v5e
topology: v5e:2x2
jax: 0.10.0
libtpu: 0.0.40
codegen_flags: <defaults>
</compile_context>

<pallas_src>
import functools

import jax
import jax.numpy as jnp
from jax.experimental import pallas as pl
from jax.experimental.pallas import tpu as pltpu

LN_EPS = 1e-5  # PyTorch nn.LayerNorm default eps


# --------------------------------------------------------------------------
# Kernels
# --------------------------------------------------------------------------
def _layernorm_rows(xf):
    """Two-pass LayerNorm over the last dim (f32 in / f32 out, affine folded
    into the weight).  Each output row depends only on its own input row, so
    garbage rows in a clipped last block can never contaminate valid rows."""
    inv_d = jnp.float32(1.0 / xf.shape[-1])
    mean = jnp.sum(xf, axis=-1, keepdims=True) * inv_d
    xc = xf - mean
    var = jnp.sum(xc * xc, axis=-1, keepdims=True) * inv_d
    return xc * jax.lax.rsqrt(var + LN_EPS)


def prenorm_fulld_kernel(x_ref, w_ref, b_ref, o_ref):
    # x_ref: (tile_m, D)   w_ref: (D, D) bf16   b_ref: (1, D) f32
    y = _layernorm_rows(x_ref[...].astype(jnp.float32)).astype(w_ref.dtype)
    out = jnp.dot(y, w_ref[...], preferred_element_type=jnp.float32)
    o_ref[...] = (out + b_ref[...]).astype(o_ref.dtype)


def prenorm_coltiled_kernel(x_ref, w_ref, b_ref, o_ref, y_ref):
    # x_ref: (tile_m, D)        re-fetched only when the row-tile index changes
    # w_ref: (D, tile_n) bf16   b_ref: (1, tile_n) f32
    # y_ref: (tile_m, D) bf16   normalized rows, computed once per row tile
    @pl.when(pl.program_id(1) == 0)
    def _():
        y_ref[...] = _layernorm_rows(
            x_ref[...].astype(jnp.float32)).astype(y_ref.dtype)

    out = jnp.dot(y_ref[...], w_ref[...], preferred_element_type=jnp.float32)
    o_ref[...] = (out + b_ref[...]).astype(o_ref.dtype)


# --------------------------------------------------------------------------
# Config heuristics
# --------------------------------------------------------------------------
def _round_up(n, m):
    return ((n + m - 1) // m) * m


def _vmem_capacity_bytes():
    try:
        return int(pltpu.get_tpu_info().vmem_capacity_bytes)
    except Exception:
        pass
    try:
        kind = jax.devices()[0].device_kind.lower()
        if ("v5" in kind) or ("v6" in kind):
            return 128 * 1024 * 1024
    except Exception:
        pass
    return 64 * 1024 * 1024  # conservative fallback: assume v7x-sized VMEM


def _largest_col_tile(D, cap=512):
    """Largest divisor of D that is a multiple of 128 and <= cap (None if none)."""
    best = None
    t = 128
    while t <= min(D, cap):
        if D % t == 0:
            best = t
        t += 128
    return best


def _pick_config(N, D, x_dtype):
    """Returns (tile_m, tile_n, w_single_buffer, vmem_limit_bytes)."""
    vmem_phys = _vmem_capacity_bytes()
    small_vmem = vmem_phys <= 64 * 1024 * 1024          # v7x: 64 MiB / TC
    vmem_limit = (vmem_phys * 3) // 4                    # headroom under physical
    budget = int(vmem_limit * 0.85)                      # headroom under the limit

    x_bytes = jnp.dtype(x_dtype).itemsize
    sublane = 16 if x_bytes == 2 else 8

    w_bytes = D * D * 2                                  # folded weight, bf16
    # Single-buffer the grid-invariant weight only when it is big enough to
    # matter (keeps tiny shapes on the plain, well-trodden spec).
    w_single_buffer = w_bytes >= 4 * 1024 * 1024
    w_resident = w_bytes if w_single_buffer else 2 * w_bytes

    # Keep the full weight resident unless it would eat more than ~half of the
    # budget; otherwise stream multiple-of-128 column slabs (weight HBM traffic
    # per row tile is D^2 regardless of tile_n, so prefer a small tile_n and a
    # large tile_m).
    if w_resident <= budget // 2:
        tile_n = D
    else:
        tile_n = _largest_col_tile(D, cap=512)
        if tile_n is None:                               # no clean 128-divisor
            tile_n = D
    col_tiled = tile_n != D

    def vmem_usage(tm):
        u = 2 * tm * D * x_bytes                         # x tile (double-buffered)
        u += 2 * tm * tile_n * x_bytes                   # out tile (double-buffered)
        u += 2 * tm * D * 4                              # f32 LN temporaries
        if col_tiled:
            u += 2 * (D * tile_n * 2 + tile_n * 4)       # weight/bias slabs (x2)
            u += tm * D * 2                              # normalized-y scratch
        else:
            u += w_resident + 2 * D * 4                  # resident weight + bias
        return u

    cap_tm = 512 if small_vmem else 1024
    tile_m = sublane
    for tm in (1024, 768, 512, 384, 256, 192, 128, 64, 32, 16, 8):
        if tm > cap_tm:
            continue
        if vmem_usage(tm) <= budget:
            tile_m = tm
            break
    tile_m = max(sublane, min(tile_m, _round_up(N, sublane)))
    tile_m = _round_up(tile_m, sublane)
    return tile_m, tile_n, w_single_buffer, int(vmem_limit)


# --------------------------------------------------------------------------
# Wrapper
# --------------------------------------------------------------------------
@functools.partial(jax.jit, static_argnames=("tile_m", "tile_n"))
def prenorm_forward(x, gamma, beta, w, bias, *, tile_m=None, tile_n=None):
    B, S, D = x.shape
    N = B * S

    tm_d, tn_d, w_single_buffer, vmem_limit = _pick_config(N, D, x.dtype)
    tile_m = tm_d if tile_m is None else tile_m
    tile_n = tn_d if tile_n is None else tile_n
    assert D % tile_n == 0, "tile_n must divide D"

    # Fold the LayerNorm affine into the linear layer (exact algebraic rewrite):
    #   (y_hat*gamma + beta) @ W + b == y_hat @ (gamma[:,None]*W) + (beta@W + b)
    f32 = jnp.float32
    w_folded = (gamma.astype(f32)[:, None] * w.astype(f32)).astype(jnp.bfloat16)
    b_folded = (beta.astype(f32) @ w.astype(f32) + bias.astype(f32)).reshape(1, D)

    x2d = x.reshape(N, D)                        # view; no HBM copy, no padding
    n_row_tiles = pl.cdiv(N, tile_m)             # ragged tail handled by clipping

    if tile_n == D:
        # ---- full-weight path: single column tile, weight grid-invariant ----
        w_kwargs = {"pipeline_mode": pl.Buffered(1)} if w_single_buffer else {}
        out2d = pl.pallas_call(
            prenorm_fulld_kernel,
            out_shape=jax.ShapeDtypeStruct((N, D), x.dtype),
            grid_spec=pltpu.PrefetchScalarGridSpec(
                num_scalar_prefetch=0,
                grid=(n_row_tiles,),
                in_specs=[
                    pl.BlockSpec((tile_m, D), lambda i: (i, 0)),
                    pl.BlockSpec((D, D), lambda i: (0, 0), **w_kwargs),
                    pl.BlockSpec((1, D), lambda i: (0, 0)),
                ],
                out_specs=pl.BlockSpec((tile_m, D), lambda i: (i, 0)),
            ),
            compiler_params=pltpu.CompilerParams(
                dimension_semantics=("parallel",),
                vmem_limit_bytes=vmem_limit,
            ),
        )(x2d, w_folded, b_folded)
    else:
        # ---- column-tiled path: LN computed once per row tile into a scratch ----
        out2d = pl.pallas_call(
            prenorm_coltiled_kernel,
            out_shape=jax.ShapeDtypeStruct((N, D), x.dtype),
            grid_spec=pltpu.PrefetchScalarGridSpec(
                num_scalar_prefetch=0,
                grid=(n_row_tiles, D // tile_n),
                in_specs=[
                    # x rows: constant block index along j -> fetched once per row tile
                    pl.BlockSpec((tile_m, D), lambda i, j: (i, 0)),
                    pl.BlockSpec((D, tile_n), lambda i, j: (0, j)),
                    pl.BlockSpec((1, tile_n), lambda i, j: (0, j)),
                ],
                out_specs=pl.BlockSpec((tile_m, tile_n), lambda i, j: (i, j)),
                scratch_shapes=[pltpu.VMEM((tile_m, D), jnp.bfloat16)],
            ),
            compiler_params=pltpu.CompilerParams(
                # Row axis parallel (megacore shards by rows on v7x); column axis
                # must be ordered because the y-scratch is filled at j == 0.
                dimension_semantics=("parallel", "arbitrary"),
                vmem_limit_bytes=vmem_limit,
            ),
        )(x2d, w_folded, b_folded)

    return out2d.reshape(B, S, D)


# --------------------------------------------------------------------------
# Reference + self-test
# --------------------------------------------------------------------------
def reference_forward(x, gamma, beta, w, bias):
    xf = x.astype(jnp.float32)
    mean = jnp.mean(xf, axis=-1, keepdims=True)
    var = jnp.mean((xf - mean) ** 2, axis=-1, keepdims=True)
    y = (xf - mean) / jnp.sqrt(var + LN_EPS) * gamma + beta
    return (y @ w + bias).astype(x.dtype)


if __name__ == "__main__":
    def _run_case(B, S, D, **tiles):
        key = jax.random.PRNGKey(0)
        kx, kg, kbeta, kw, kb = jax.random.split(key, 5)
        x = jax.random.normal(kx, (B, S, D), dtype=jnp.float32)
        # Perturb LN affine away from (1, 0) so affine folding is exercised.
        gamma = 1.0 + 0.1 * jax.random.normal(kg, (D,), dtype=jnp.float32)
        beta = 0.05 * jax.random.normal(kbeta, (D,), dtype=jnp.float32)
        w = jax.random.normal(kw, (D, D), dtype=jnp.float32) * 0.02
        bias = jax.random.normal(kb, (D,), dtype=jnp.float32) * 0.01

        out = jax.block_until_ready(
            prenorm_forward(x, gamma, beta, w, bias, **tiles))
        ref = reference_forward(x, gamma, beta, w, bias)
        assert out.shape == (B, S, D)
        # bf16 MXU inputs with f32 LN stats / f32 accumulation -> slightly looser
        # tolerance than the pure-f32 reference.
        assert jnp.allclose(out, ref, atol=2e-2, rtol=2e-2), f"mismatch (D={D})"

    # 1) default config path (full-weight kernel), module-sized small shape
    _run_case(2, 8, 32)
    # 2) explicitly exercise the column-tiled kernel (y scratch + pl.when) and
    #    the clipped ragged last row tile (N=32, tile_m=24 -> 2 row tiles).
    _run_case(2, 16, 256, tile_m=24, tile_n=128)

    print("KERNEL_OK")
</pallas_src>

<mosaic_0001>
module attributes {stable_mosaic.version = 11 : i64} {
  func.func @prenorm_fulld_kernel(%arg0: i32, %arg1: memref<16x32xf32, #tpu.memory_space<vmem>>, %arg2: memref<32x32xbf16, #tpu.memory_space<vmem>>, %arg3: memref<1x32xf32, #tpu.memory_space<vmem>>, %arg4: memref<16x32xf32, #tpu.memory_space<vmem>>) attributes {dimension_semantics = [#tpu.dimension_semantics<parallel>], iteration_bounds = array<i64: 1>, scalar_prefetch = 0 : i64, scratch_operands = 0 : i64, tpu.core_type = #tpu.core_type<tc>, window_params = [{transform_indices = @transform_0, window_bounds = array<i64: 16, 32>}, {pipeline_mode = #tpu.pipeline_mode<synchronous>, transform_indices = @transform_1, window_bounds = array<i64: 32, 32>}, {pipeline_mode = #tpu.pipeline_mode<synchronous>, transform_indices = @transform_2, window_bounds = array<i64: 1, 32>}, {transform_indices = @transform_3, window_bounds = array<i64: 16, 32>}]} {
    %c0 = arith.constant 0 : index
    %c0_0 = arith.constant 0 : index
    %0 = vector.load %arg1[%c0, %c0_0] : memref<16x32xf32, #tpu.memory_space<vmem>>, vector<16x32xf32>
    %cst = arith.constant dense<0.000000e+00> : vector<16xf32>
    %1 = vector.multi_reduction <add>, %0, %cst [1] : vector<16x32xf32> to vector<16xf32>
    %2 = vector.shape_cast %1 : vector<16xf32> to vector<16x1xf32>
    %cst_1 = arith.constant 3.125000e-02 : f32
    %3 = vector.broadcast %cst_1 : f32 to vector<16x1xf32>
    %4 = arith.mulf %2, %3 : vector<16x1xf32>
    %5 = vector.broadcast %4 : vector<16x1xf32> to vector<16x32xf32>
    %6 = arith.subf %0, %5 : vector<16x32xf32>
    %7 = arith.mulf %6, %6 : vector<16x32xf32>
    %cst_2 = arith.constant dense<0.000000e+00> : vector<16xf32>
    %8 = vector.multi_reduction <add>, %7, %cst_2 [1] : vector<16x32xf32> to vector<16xf32>
    %9 = vector.shape_cast %8 : vector<16xf32> to vector<16x1xf32>
    %cst_3 = arith.constant 3.125000e-02 : f32
    %10 = vector.broadcast %cst_3 : f32 to vector<16x1xf32>
    %11 = arith.mulf %9, %10 : vector<16x1xf32>
    %cst_4 = arith.constant 9.99999974E-6 : f32
    %12 = vector.broadcast %cst_4 : f32 to vector<16x1xf32>
    %13 = arith.addf %11, %12 : vector<16x1xf32>
    %14 = math.rsqrt %13 : vector<16x1xf32>
    %15 = vector.broadcast %14 : vector<16x1xf32> to vector<16x32xf32>
    %16 = arith.mulf %6, %15 : vector<16x32xf32>
    %17 = arith.truncf %16 : vector<16x32xf32> to vector<16x32xbf16>
    %c0_5 = arith.constant 0 : index
    %c0_6 = arith.constant 0 : index
    %18 = vector.load %arg2[%c0_5, %c0_6] : memref<32x32xbf16, #tpu.memory_space<vmem>>, vector<32x32xbf16>
    %cst_7 = arith.constant dense<0.000000e+00> : vector<16x32xf32>
    %19 = tpu.matmul %17, %18, %cst_7 {dimension_numbers = #tpu.dot_dimension_numbers<[1], [0], [0], [1], [0, 0, 1, 1], [], []>} : vector<16x32xbf16>, vector<32x32xbf16>, vector<16x32xf32> -> vector<16x32xf32>
    %c0_8 = arith.constant 0 : index
    %c0_9 = arith.constant 0 : index
    %20 = vector.load %arg3[%c0_8, %c0_9] : memref<1x32xf32, #tpu.memory_space<vmem>>, vector<1x32xf32>
    %21 = vector.broadcast %20 : vector<1x32xf32> to vector<16x32xf32>
    %22 = arith.addf %19, %21 : vector<16x32xf32>
    %c0_10 = arith.constant 0 : index
    %c0_11 = arith.constant 0 : index
    %23 = vector.load %arg4[%c0_10, %c0_11] : memref<16x32xf32, #tpu.memory_space<vmem>>, vector<16x32xf32>
    tpu.vector_store %arg4[%c0_10, %c0_11], %22 {strides = array<i32>} : memref<16x32xf32, #tpu.memory_space<vmem>>, vector<16x32xf32>,
    return
  }
  func.func @transform_0(%arg0: i32) -> (i32, i32) {
    %c0_i32 = arith.constant 0 : i32
    %c0_i32_0 = arith.constant 0 : i32
    return %arg0, %c0_i32 : i32, i32
  }
  func.func @transform_1(%arg0: i32) -> (i32, i32) {
    %c0_i32 = arith.constant 0 : i32
    %c0_i32_0 = arith.constant 0 : i32
    %c0_i32_1 = arith.constant 0 : i32
    return %c0_i32, %c0_i32_0 : i32, i32
  }
  func.func @transform_2(%arg0: i32) -> (i32, i32) {
    %c0_i32 = arith.constant 0 : i32
    %c0_i32_0 = arith.constant 0 : i32
    %c0_i32_1 = arith.constant 0 : i32
    return %c0_i32, %c0_i32_0 : i32, i32
  }
  func.func @transform_3(%arg0: i32) -> (i32, i32) {
    %c0_i32 = arith.constant 0 : i32
    %c0_i32_0 = arith.constant 0 : i32
    return %arg0, %c0_i32 : i32, i32
  }
}

</mosaic_0001>

<llo_original>
// kernel: prenorm_forward.1
$region0: #{prenorm_forward.1}
  #allocation0 [shape = 'u32[]', space=smem, size = 0x4, offset = 0x4, fixed_abs, tag = 'smem constant byte address 0x4 - core index']
  #allocation1 [shape = 'u32[72,128]{1,0:T(1,128)}', space=vmem, size = 0x9000, scoped, tag = 'internal scratch']
  %s0 = inlined_call_operand.vmem [shape: f32[16,32], index: 0, kind: input, shape index: {}]
  %s1 = inlined_call_operand.vmem [shape: bf16[32,32], index: 1, kind: input, shape index: {}]
  %s2 = inlined_call_operand.vmem [shape: f32[1,32], index: 2, kind: input, shape index: {}]
  %s3 = inlined_call_operand.hbm [shape: f32[16,32], index: 3, kind: output, shape index: {}]
  %s4 = sld [smem:[#allocation0]]
  $region22: #{prenorm_forward.1} parent=0
    _
  %s6 = ssub.s32 1, %s4
  %s7 = scalar_select 0, %s6, %s4
  $region1: #{prenorm_forward.1} parent=0
    #allocation2 [shape = 'u8[8192]{0}', space=vmem, size = 0x2000, scoped, tag = 'output window, operand 0, single buffered']
    #allocation3 [shape = 's32[1]{0}', space=sflag, size = 0x4, scoped, tag = 'scoped memory for prenorm_forward.1']
    %8 = vsyncpa [#allocation3], 0
    // Predicated region
    $region2: #{prenorm_forward.1} parent=1 // pred_check
      _
    $region3: #{prenorm_forward.1} parent=1 // pred_check_branch
      %10 = sbr.rel (0) target = $region5
    $region4: #{prenorm_forward.1} parent=1 // pred_region
      _
    $region5: #{prenorm_forward.1} parent=1 // pred_fallthru
      _
    // Predicated region
    $region6: #{prenorm_forward.1} parent=1 // pred_check
      _
    $region7: #{prenorm_forward.1} parent=1 // pred_check_branch
      %12 = sbr.rel (0) target = $region9
    $region8: #{prenorm_forward.1} parent=1 // pred_region
      _
    $region9: #{prenorm_forward.1} parent=1 // pred_fallthru
      _
    // Predicated region
    $region10: #{prenorm_forward.1} parent=1 // pred_check
      _
    $region11: #{prenorm_forward.1} parent=1 // pred_check_branch
      %14 = sbr.rel (0) target = $region13
    $region12: #{prenorm_forward.1} parent=1 // pred_region
      _
    $region13: #{prenorm_forward.1} parent=1 // pred_fallthru
      _
    %v16 = vld [vmem:[%s0] sm:$0xff]
    %v17 = vld [vmem:[%s0 + $0x8] sm:$0xff]
    %vm18 = vcmask 261120
    %v19 = vsel %vm18, %v16, 0.0
    %20 = vadd.xlane.f32.xlu0 %v19
    %v21 = vpop.xlane.xlu0 %20
    %v22 = vsel %vm18, %v17, 0.0
    %23 = vadd.xlane.f32.xlu0 %v22
    %v24 = vpop.xlane.xlu0 %23
    %v25 = vmul.f32 %v21, 0.03125
    %v26 = vmul.f32 %v24, 0.03125
    %v27 = vsub.f32 %v16, %v25
    %v28 = vsub.f32 %v17, %v26
    %v29 = vmul.f32 %v27, %v27
    %v30 = vmul.f32 %v28, %v28
    %v31 = vsel %vm18, %v29, 0.0
    %32 = vadd.xlane.f32.xlu0 %v31
    %v33 = vpop.xlane.xlu0 %32
    %v34 = vsel %vm18, %v30, 0.0
    %35 = vadd.xlane.f32.xlu0 %v34
    %v36 = vpop.xlane.xlu0 %35
    %v37 = vmul.f32 %v33, 0.03125
    %v38 = vmul.f32 %v36, 0.03125
    %v39 = vadd.f32 %v37, 1e-05
    %v40 = vadd.f32 %v38, 1e-05
    %v41 = vrsqrt.pop %v39
    %v42 = vmul.f32 %v41, %v39
    %v43 = vmul.f32 %v42, %v41
    %v44 = vmul.f32 0.5, %v43
    %v45 = vsub.f32 1.5, %v44
    %v46 = vmul.f32 %v41, %v45
    %vm47 = vweird.f32 %v39
    %vm48 = vweird.f32 %v41
    %vm49 = vmor %vm47, %vm48
    %v50 = vsel %vm49, %v41, %v46
    %v51 = vrsqrt.pop %v40
    %v52 = vmul.f32 %v51, %v40
    %v53 = vmul.f32 %v52, %v51
    %v54 = vmul.f32 0.5, %v53
    %v55 = vsub.f32 1.5, %v54
    %v56 = vmul.f32 %v51, %v55
    %vm57 = vweird.f32 %v40
    %vm58 = vweird.f32 %v51
    %vm59 = vmor %vm57, %vm58
    %v60 = vsel %vm59, %v51, %v56
    %v61 = vmul.f32 %v27, %v50
    %v62 = vmul.f32 %v28, %v60
    %v63 = vpack.c.bf16 %v62, %v61
    %v64 = vld [vmem:[%s1] sm:$0xf]
    %v65 = vld [vmem:[%s1 + $0x4] sm:$0xf]
    %v66 = vld [vmem:[%s1 + $0x8] sm:$0xf]
    %v67 = vld [vmem:[%s1 + $0xc] sm:$0xf]
    %v68 = vld [vmem:[%s2] sm:$0x1]
    %v70 = vperm.slane %v68, 0
    %v76 = vunpack.c.l.b16 %v64
    %v77 = vunpack.c.l.b16 %v65
    %v78 = vunpack.c.l.b16 %v66
    %v79 = vunpack.c.l.b16 %v67
    %v80 = vpack.c.b16 %v77, %v76
    %v81 = vpack.c.b16 %v79, %v78
    %v85 = vsel %vm18, %v63, 0
    %87 = vmatpush.bf16.msra.mxu0 0
    %88 = vmatpush.bf16.msra.mxu0 0
    %89 = vmatpush.bf16.msra.mxu0 0
    %90 = vmatpush.bf16.msra.mxu0 0
    %91 = vmatpush.bf16.msra.mxu0 0
    %92 = vmatpush.bf16.msra.mxu0 0
    %93 = vmatpush.bf16.msra.mxu0 %v81
    %94 = vmatpush.bf16.msra.mxu0 %v80
    %95 = vmatmul.bf16.gmra.mxu0 %v85
    %v96 = vpop.f32.mrf.mxu0
    %v97 = vadd.f32 %v70, %v96
    %v98 = vpop.f32.mrf.mxu0
    %v99 = vadd.f32 %v70, %v98
    %100 = vdwg.mxu0
    %101 = vst.msk [vmem:[#allocation2] sm:$0xff] %vm18, %v97
    %102 = vst.msk [vmem:[#allocation2 + $0x8] sm:$0xff] %vm18, %v99
    // Predicated region
    $region14: #{prenorm_forward.1} parent=1 // pred_check
      _
    $region15: #{prenorm_forward.1} parent=1 // pred_check_branch
      %104 = sbr.rel (0) target = $region17
    $region16: #{prenorm_forward.1} parent=1 // pred_region
      %106 = vsyncadd [#allocation3], 0
      %s107 = sshll.u32 [#allocation2], 4
      %s108 = int_to_ptr.vmem [resolvable:$true] %s107
      %s109 = sshll.u32 %s3, 4
      %s110 = int_to_ptr.hbm [resolvable:$true] %s109
      %115 = dma.vmem_to_hbm [thread:$0]  %s108, 256, %s110, [#allocation3], 128, 128, 8
    $region17: #{prenorm_forward.1} parent=1 // pred_fallthru
      _
    // Predicated region
    $region18: #{prenorm_forward.1} parent=1 // pred_check
      _
    $region19: #{prenorm_forward.1} parent=1 // pred_check_branch
      %117 = sbr.rel (0) target = $region21
    $region20: #{prenorm_forward.1} parent=1 // pred_region
      %119 = dma.done [#allocation3], 256
    $region21: #{prenorm_forward.1} parent=1 // pred_fallthru
      _
    %120 = vsyncpa [#allocation3], 1

</llo_original>
